<compile_context>
chip_gen: v7x
topology: tpu7x:2x2x1
jax: 0.10.0
libtpu: 0.0.40
codegen_flags: <defaults>
</compile_context>

<pallas_src>
import math

import jax
import jax.numpy as jnp
from jax.experimental import pallas as pl
from jax.experimental.pallas import tpu as pltpu


def round_up(x, m):
    return ((x + m - 1) // m) * m


def cdiv(a, b):
    return (a + b - 1) // b


# ---------------------------------------------------------------------------
# Parameter slab layout (weight blocks padded to lane/row multiples of 128)
# ---------------------------------------------------------------------------
def slab_layout(IA, LD, unit):
    IAP = round_up(IA, 128)          # padded reconstruction width
    U3P = round_up(unit * 3, 128)    # padded hidden (unit*3)
    UP = round_up(unit, 128)         # padded hidden (unit)
    ZP = 128                         # padded latent group width
    assert LD <= ZP and 3 * LD <= ZP, "latent dim too large for packed output"
    W = max(IAP, U3P, UP, 2 * ZP)    # slab lane width

    rows = {}
    off = 0
    for name, nrows in (("w11", IAP),   # fc1_1.weight^T  [IA , 3u]
                        ("w12", U3P),   # fc1_2.weight^T  [3u , u ]
                        ("whd", UP),    # fused head      [u  , 2*ZP] (mu | logvar)
                        ("w3", ZP),     # fc3.weight^T    [LD , u ]
                        ("w42", UP),    # fc4_2.weight^T  [u  , 3u]
                        ("w43", U3P)):  # fc4_3.weight^T  [3u , IA]
        rows[name] = off
        off += nrows
    return dict(IAP=IAP, U3P=U3P, UP=UP, ZP=ZP, W=W, rows=rows, n_rows=off)


def pack_params(params, layout):
    """Pack weights into one bf16 slab and biases into a small f32 slab."""
    rows, W, ZP = layout["rows"], layout["W"], layout["ZP"]
    wslab = jnp.zeros((layout["n_rows"], W), jnp.float32)
    bslab = jnp.zeros((8, W), jnp.float32)   # 6 bias rows + 2 pad rows

    def put(s, r, c, arr):
        return s.at[r:r + arr.shape[0], c:c + arr.shape[1]].set(arr)

    (w11, b11), (w12, b12) = params["fc1_1"], params["fc1_2"]
    (w2m, b2m), (w2s, b2s) = params["fc2m"], params["fc2s"]
    (w3, b3), (w42, b42), (w43, b43) = params["fc3"], params["fc4_2"], params["fc4_3"]

    wslab = put(wslab, rows["w11"], 0, w11)
    wslab = put(wslab, rows["w12"], 0, w12)
    wslab = put(wslab, rows["whd"], 0, w2m)     # mu head  -> lanes [0, LD)
    wslab = put(wslab, rows["whd"], ZP, w2s)    # logvar   -> lanes [ZP, ZP+LD)
    wslab = put(wslab, rows["w3"], 0, w3)
    wslab = put(wslab, rows["w42"], 0, w42)
    wslab = put(wslab, rows["w43"], 0, w43)

    bslab = put(bslab, 0, 0, b11)
    bslab = put(bslab, 1, 0, b12)
    bslab = put(bslab, 2, 0, b2m)
    bslab = put(bslab, 2, ZP, b2s)
    bslab = put(bslab, 3, 0, b3)
    bslab = put(bslab, 4, 0, b42)
    bslab = put(bslab, 5, 0, b43)
    return wslab.astype(jnp.bfloat16), bslab


# ---------------------------------------------------------------------------
# Kernel
# ---------------------------------------------------------------------------
def make_vae_kernel(layout, IA, LD):
    IAP, U3P, UP, ZP = layout["IAP"], layout["U3P"], layout["UP"], layout["ZP"]
    rows = layout["rows"]
    r_w11, r_w12, r_whd = rows["w11"], rows["w12"], rows["whd"]
    r_w3, r_w42, r_w43 = rows["w3"], rows["w42"], rows["w43"]

    def kernel(x_ref, eps_ref, w_ref, b_ref, out_ref):
        f32, bf16 = jnp.float32, jnp.bfloat16
        x = x_ref[...]                      # [TB, IA]  f32, no lane padding
        eps = eps_ref[...]                  # [TB, LD]  f32, no lane padding
        tb = x.shape[0]

        def dot(a, r0, nrows, ncols):
            # bf16 x bf16 -> f32 accumulation on the MXU.
            return jnp.dot(a.astype(bf16), w_ref[r0:r0 + nrows, 0:ncols],
                           preferred_element_type=f32)

        def bias(k, ncols):
            return b_ref[k:k + 1, 0:ncols]  # f32 [1, ncols]

        # ---- encoder: fc1_1 -> relu -> fc1_2 -> relu ----
        h = jnp.maximum(dot(x, r_w11, IA, U3P) + bias(0, U3P), 0.0)
        h = jnp.maximum(dot(h, r_w12, U3P, UP) + bias(1, UP), 0.0)

        # ---- fused mu/logvar head: one matmul, mu lanes [0,ZP), logvar [ZP,2ZP)
        head = dot(h, r_whd, UP, 2 * ZP) + bias(2, 2 * ZP)
        mu = head[:, 0:ZP]                  # valid lanes [0, LD), tail exactly 0
        logvar = head[:, ZP:2 * ZP]         # valid lanes [0, LD), tail exactly 0

        # ---- reparameterize: z = mu + eps * exp(0.5 * logvar) ----
        if LD < ZP:
            eps_w = jnp.concatenate(
                [eps, jnp.zeros((tb, ZP - LD), f32)], axis=1)
        else:
            eps_w = eps
        z = mu + eps_w * jnp.exp(0.5 * logvar)   # tail lanes stay exactly 0

        # ---- tr_full_connection: relu -> fc3 -> relu ----
        t = jnp.maximum(z, 0.0)
        t = jnp.maximum(dot(t, r_w3, ZP, UP) + bias(3, UP), 0.0)

        # ---- decoder: fc4_2 -> relu -> fc4_3 -> sigmoid ----
        d = jnp.maximum(dot(t, r_w42, UP, U3P) + bias(4, U3P), 0.0)
        logits = dot(d, r_w43, U3P, IAP) + bias(5, IAP)      # [TB, IAP]
        y = 0.5 * (jnp.tanh(0.5 * logits) + 1.0)             # sigmoid on the EUP

        # ---- packed, lane-dense output: group0 = [z|mu|logvar|0], group1 = y
        # mu/logvar/z have exact zero tails, so two XLU rolls pack them for free.
        group0 = (z
                  + pltpu.roll(mu, LD, axis=1)
                  + pltpu.roll(logvar, 2 * LD, axis=1))
        out_ref[:, 0:ZP] = group0
        out_ref[:, ZP:ZP + IAP] = y

    return kernel


# ---------------------------------------------------------------------------
# Parameter init (PyTorch nn.Linear defaults, weights pre-transposed to (in,out))
# ---------------------------------------------------------------------------
def init_linear(key, fan_in, fan_out):
    kw, kb = jax.random.split(key)
    bound = 1.0 / math.sqrt(fan_in)
    w = jax.random.uniform(kw, (fan_in, fan_out), jnp.float32, -bound, bound)
    b = jax.random.uniform(kb, (1, fan_out), jnp.float32, -bound, bound)
    return w, b


def make_params(key, IA, LD):
    unit = int((IA - LD) / 4) + 40
    keys = jax.random.split(key, 7)
    p = {
        "fc1_1": init_linear(keys[0], IA, unit * 3),
        "fc1_2": init_linear(keys[1], unit * 3, unit),
        "fc2m": init_linear(keys[2], unit, LD),
        "fc2s": init_linear(keys[3], unit, LD),
        "fc3": init_linear(keys[4], LD, unit),
        "fc4_2": init_linear(keys[5], unit, unit * 3),
        "fc4_3": init_linear(keys[6], unit * 3, IA),
    }
    return p, unit


# ---------------------------------------------------------------------------
# Wrapper
# ---------------------------------------------------------------------------
def _pad_rows(a, n):
    if a.shape[0] == n:
        return a
    pad = jnp.zeros((n - a.shape[0],) + a.shape[1:], a.dtype)
    return jnp.concatenate([a, pad], axis=0)


def vae_forward(x, eps, wslab, bslab, layout, IA, BS, LD):
    IAP, ZP, W, n_rows = layout["IAP"], layout["ZP"], layout["W"], layout["n_rows"]

    x = jnp.asarray(x, jnp.float32).reshape(-1, IA)    # x.view(-1, IA)
    B = x.shape[0]
    assert B == BS, "x must contain exactly BATCH_SIZE rows of INPUT_AXIS"
    eps = jnp.asarray(eps, jnp.float32).reshape(B, LD)

    # Batch tiling: tiles up to 512 rows; force >=2 grid steps when the batch
    # allows so the "parallel" axis can shard over v7x's two TensorCores.
    MAX_TB = 512
    BSP = round_up(B, 8)
    n_tiles = cdiv(BSP, MAX_TB)
    if BSP >= 16:
        n_tiles = max(n_tiles, 2)
    TB = round_up(cdiv(BSP, n_tiles), 8)
    BSP = TB * n_tiles

    xp = _pad_rows(x, BSP)          # only pads rows (never lanes), often a no-op
    epsp = _pad_rows(eps, BSP)

    OUTW = ZP + IAP                 # [ z|mu|logvar (128-lane group) | y group ]
    kernel = make_vae_kernel(layout, IA, LD)

    cp_cls = getattr(pltpu, "CompilerParams", None) or getattr(
        pltpu, "TPUCompilerParams")

    out = pl.pallas_call(
        kernel,
        grid=(n_tiles,),
        in_specs=[
            pl.BlockSpec((TB, IA), lambda i: (i, 0)),       # x tile (unpadded lanes)
            pl.BlockSpec((TB, LD), lambda i: (i, 0)),       # eps tile (unpadded lanes)
            pl.BlockSpec((n_rows, W), lambda i: (0, 0)),    # resident bf16 weight slab
            pl.BlockSpec((8, W), lambda i: (0, 0)),         # resident f32 bias slab
        ],
        out_specs=pl.BlockSpec((TB, OUTW), lambda i: (i, 0)),
        out_shape=jax.ShapeDtypeStruct((BSP, OUTW), jnp.float32),
        compiler_params=cp_cls(dimension_semantics=("parallel",)),
    )(xp, epsp, wslab, bslab)

    z = out[:B, 0:LD]
    mu = out[:B, LD:2 * LD]
    logvar = out[:B, 2 * LD:3 * LD]
    y = out[:B, ZP:ZP + IA].reshape(BS, IA)                 # .view(BS, IA)
    return z, y, mu, logvar


# ---------------------------------------------------------------------------
# Pure-JAX reference for the correctness check
# ---------------------------------------------------------------------------
def vae_forward_ref(x, eps, params, IA, BS, LD):
    x = x.reshape(-1, IA)
    (w11, b11), (w12, b12) = params["fc1_1"], params["fc1_2"]
    (w2m, b2m), (w2s, b2s) = params["fc2m"], params["fc2s"]
    (w3, b3), (w42, b42), (w43, b43) = params["fc3"], params["fc4_2"], params["fc4_3"]
    h = jax.nn.relu(x @ w11 + b11)
    h = jax.nn.relu(h @ w12 + b12)
    mu = h @ w2m + b2m
    logvar = h @ w2s + b2s
    z = mu + eps * jnp.exp(0.5 * logvar)
    t = jax.nn.relu(z)
    t = jax.nn.relu(t @ w3 + b3)
    d = jax.nn.relu(t @ w42 + b42)
    y = jax.nn.sigmoid(d @ w43 + b43).reshape(BS, IA)
    return z, y, mu, logvar


def _quantize_weights(params):
    """Reference uses the same bf16-quantized weights as the kernel slab."""
    q = lambda a: a.astype(jnp.bfloat16).astype(jnp.float32)
    return {k: (q(w), b) for k, (w, b) in params.items()}


def _check(got, want, name, atol=2e-2, rtol=2e-2):
    assert jnp.allclose(got, want, atol=atol, rtol=rtol), f"{name} mismatch"


if __name__ == "__main__":
    # Small shapes consistent with the module: input axis 64, latent 8.
    IA, LD = 64, 8

    key = jax.random.PRNGKey(0)
    k_params, k_x, k_eps, k_x2, k_eps2 = jax.random.split(key, 5)

    params, unit = make_params(k_params, IA, LD)      # unit = (64-8)//4 + 40 = 54
    layout = slab_layout(IA, LD, unit)
    wslab, bslab = pack_params(params, layout)
    params_q = _quantize_weights(params)

    # --- case 1: batch = 8 (single tile) -----------------------------------
    BS = 8
    x = jax.random.normal(k_x, (BS, IA), jnp.float32)
    # TODO(synk): torch.randn_like(std) is supplied as an explicit, deterministic
    # eps input here; in production it could be drawn in-kernel via pltpu.prng_*.
    eps = jax.random.normal(k_eps, (BS, LD), jnp.float32)

    z, y, mu, logvar = jax.block_until_ready(
        vae_forward(x, eps, wslab, bslab, layout, IA, BS, LD))
    z_r, y_r, mu_r, lv_r = vae_forward_ref(x, eps, params_q, IA, BS, LD)
    _check(z, z_r, "z"); _check(y, y_r, "y")
    _check(mu, mu_r, "mu"); _check(logvar, lv_r, "logvar")

    # --- case 2: batch = 20 (row padding + 2 parallel grid steps) -----------
    BS2 = 20
    x2 = jax.random.normal(k_x2, (BS2, IA), jnp.float32)
    eps2 = jax.random.normal(k_eps2, (BS2, LD), jnp.float32)

    z2, y2, mu2, lv2 = jax.block_until_ready(
        vae_forward(x2, eps2, wslab, bslab, layout, IA, BS2, LD))
    z2_r, y2_r, mu2_r, lv2_r = vae_forward_ref(x2, eps2, params_q, IA, BS2, LD)
    _check(z2, z2_r, "z(2)"); _check(y2, y2_r, "y(2)")
    _check(mu2, mu2_r, "mu(2)"); _check(lv2, lv2_r, "logvar(2)")

    print("KERNEL_OK")
</pallas_src>

<mosaic_0001>
module attributes {stable_mosaic.version = 11 : i64} {
  func.func @kernel(%arg0: i32, %arg1: memref<8x64xf32, #tpu.memory_space<vmem>>, %arg2: memref<8x8xf32, #tpu.memory_space<vmem>>, %arg3: memref<1024x256xbf16, #tpu.memory_space<vmem>>, %arg4: memref<8x256xf32, #tpu.memory_space<vmem>>, %arg5: memref<8x256xf32, #tpu.memory_space<vmem>>) attributes {dimension_semantics = [#tpu.dimension_semantics<parallel>], iteration_bounds = array<i64: 1>, scalar_prefetch = 0 : i64, scratch_operands = 0 : i64, tpu.core_type = #tpu.core_type<tc>, window_params = [{transform_indices = @transform_0, window_bounds = array<i64: 8, 64>}, {transform_indices = @transform_1, window_bounds = array<i64: 8, 8>}, {pipeline_mode = #tpu.pipeline_mode<synchronous>, transform_indices = @transform_2, window_bounds = array<i64: 1024, 256>}, {pipeline_mode = #tpu.pipeline_mode<synchronous>, transform_indices = @transform_3, window_bounds = array<i64: 8, 256>}, {transform_indices = @transform_4, window_bounds = array<i64: 8, 256>}]} {
    %c0 = arith.constant 0 : index
    %c0_0 = arith.constant 0 : index
    %0 = vector.load %arg1[%c0, %c0_0] : memref<8x64xf32, #tpu.memory_space<vmem>>, vector<8x64xf32>
    %c0_1 = arith.constant 0 : index
    %c0_2 = arith.constant 0 : index
    %1 = vector.load %arg2[%c0_1, %c0_2] : memref<8x8xf32, #tpu.memory_space<vmem>>, vector<8x8xf32>
    %2 = arith.truncf %0 : vector<8x64xf32> to vector<8x64xbf16>
    %c0_3 = arith.constant 0 : index
    %c0_4 = arith.constant 0 : index
    %3 = vector.load %arg3[%c0_3, %c0_4] : memref<1024x256xbf16, #tpu.memory_space<vmem>>, vector<64x256xbf16>
    %cst = arith.constant dense<0.000000e+00> : vector<8x256xf32>
    %4 = tpu.matmul %2, %3, %cst {dimension_numbers = #tpu.dot_dimension_numbers<[1], [0], [0], [1], [0, 0, 1, 1], [], []>} : vector<8x64xbf16>, vector<64x256xbf16>, vector<8x256xf32> -> vector<8x256xf32>
    %c0_5 = arith.constant 0 : index
    %c0_6 = arith.constant 0 : index
    %5 = vector.load %arg4[%c0_5, %c0_6] : memref<8x256xf32, #tpu.memory_space<vmem>>, vector<1x256xf32>
    %6 = vector.broadcast %5 : vector<1x256xf32> to vector<8x256xf32>
    %7 = arith.addf %4, %6 : vector<8x256xf32>
    %cst_7 = arith.constant 0.000000e+00 : f32
    %8 = vector.broadcast %cst_7 : f32 to vector<8x256xf32>
    %9 = arith.maximumf %7, %8 : vector<8x256xf32>
    %10 = arith.truncf %9 : vector<8x256xf32> to vector<8x256xbf16>
    %c128 = arith.constant 128 : index
    %c0_8 = arith.constant 0 : index
    %11 = vector.load %arg3[%c128, %c0_8] : memref<1024x256xbf16, #tpu.memory_space<vmem>>, vector<256x128xbf16>
    %cst_9 = arith.constant dense<0.000000e+00> : vector<8x128xf32>
    %12 = tpu.matmul %10, %11, %cst_9 {dimension_numbers = #tpu.dot_dimension_numbers<[1], [0], [0], [1], [0, 0, 1, 1], [], []>} : vector<8x256xbf16>, vector<256x128xbf16>, vector<8x128xf32> -> vector<8x128xf32>
    %c1 = arith.constant 1 : index
    %c0_10 = arith.constant 0 : index
    %13 = vector.load %arg4[%c1, %c0_10] : memref<8x256xf32, #tpu.memory_space<vmem>>, vector<1x128xf32>
    %14 = vector.broadcast %13 : vector<1x128xf32> to vector<8x128xf32>
    %15 = arith.addf %12, %14 : vector<8x128xf32>
    %cst_11 = arith.constant 0.000000e+00 : f32
    %16 = vector.broadcast %cst_11 : f32 to vector<8x128xf32>
    %17 = arith.maximumf %15, %16 : vector<8x128xf32>
    %18 = arith.truncf %17 : vector<8x128xf32> to vector<8x128xbf16>
    %c384 = arith.constant 384 : index
    %c0_12 = arith.constant 0 : index
    %19 = vector.load %arg3[%c384, %c0_12] : memref<1024x256xbf16, #tpu.memory_space<vmem>>, vector<128x256xbf16>
    %cst_13 = arith.constant dense<0.000000e+00> : vector<8x256xf32>
    %20 = tpu.matmul %18, %19, %cst_13 {dimension_numbers = #tpu.dot_dimension_numbers<[1], [0], [0], [1], [0, 0, 1, 1], [], []>} : vector<8x128xbf16>, vector<128x256xbf16>, vector<8x256xf32> -> vector<8x256xf32>
    %c2 = arith.constant 2 : index
    %c0_14 = arith.constant 0 : index
    %21 = vector.load %arg4[%c2, %c0_14] : memref<8x256xf32, #tpu.memory_space<vmem>>, vector<1x256xf32>
    %22 = vector.broadcast %21 : vector<1x256xf32> to vector<8x256xf32>
    %23 = arith.addf %20, %22 : vector<8x256xf32>
    %24 = vector.extract_strided_slice %23 {offsets = [0, 0], sizes = [8, 128], strides = [1, 1]} : vector<8x256xf32> to vector<8x128xf32>
    %25 = vector.extract_strided_slice %23 {offsets = [0, 128], sizes = [8, 128], strides = [1, 1]} : vector<8x256xf32> to vector<8x128xf32>
    %cst_15 = arith.constant 0.000000e+00 : f32
    %26 = vector.broadcast %cst_15 : f32 to vector<8x120xf32>
    %27 = tpu.concatenate %1, %26 in 1 : vector<8x8xf32>, vector<8x120xf32> -> vector<8x128xf32>
    %cst_16 = arith.constant 5.000000e-01 : f32
    %28 = vector.broadcast %cst_16 : f32 to vector<8x128xf32>
    %29 = arith.mulf %28, %25 : vector<8x128xf32>
    %30 = math.exp %29 : vector<8x128xf32>
    %31 = arith.mulf %27, %30 : vector<8x128xf32>
    %32 = arith.addf %24, %31 : vector<8x128xf32>
    %cst_17 = arith.constant 0.000000e+00 : f32
    %33 = vector.broadcast %cst_17 : f32 to vector<8x128xf32>
    %34 = arith.maximumf %32, %33 : vector<8x128xf32>
    %35 = arith.truncf %34 : vector<8x128xf32> to vector<8x128xbf16>
    %c512 = arith.constant 512 : index
    %c0_18 = arith.constant 0 : index
    %36 = vector.load %arg3[%c512, %c0_18] : memref<1024x256xbf16, #tpu.memory_space<vmem>>, vector<128x128xbf16>
    %cst_19 = arith.constant dense<0.000000e+00> : vector<8x128xf32>
    %37 = tpu.matmul %35, %36, %cst_19 {dimension_numbers = #tpu.dot_dimension_numbers<[1], [0], [0], [1], [0, 0, 1, 1], [], []>} : vector<8x128xbf16>, vector<128x128xbf16>, vector<8x128xf32> -> vector<8x128xf32>
    %c3 = arith.constant 3 : index
    %c0_20 = arith.constant 0 : index
    %38 = vector.load %arg4[%c3, %c0_20] : memref<8x256xf32, #tpu.memory_space<vmem>>, vector<1x128xf32>
    %39 = vector.broadcast %38 : vector<1x128xf32> to vector<8x128xf32>
    %40 = arith.addf %37, %39 : vector<8x128xf32>
    %cst_21 = arith.constant 0.000000e+00 : f32
    %41 = vector.broadcast %cst_21 : f32 to vector<8x128xf32>
    %42 = arith.maximumf %40, %41 : vector<8x128xf32>
    %43 = arith.truncf %42 : vector<8x128xf32> to vector<8x128xbf16>
    %c640 = arith.constant 640 : index
    %c0_22 = arith.constant 0 : index
    %44 = vector.load %arg3[%c640, %c0_22] : memref<1024x256xbf16, #tpu.memory_space<vmem>>, vector<128x256xbf16>
    %cst_23 = arith.constant dense<0.000000e+00> : vector<8x256xf32>
    %45 = tpu.matmul %43, %44, %cst_23 {dimension_numbers = #tpu.dot_dimension_numbers<[1], [0], [0], [1], [0, 0, 1, 1], [], []>} : vector<8x128xbf16>, vector<128x256xbf16>, vector<8x256xf32> -> vector<8x256xf32>
    %c4 = arith.constant 4 : index
    %c0_24 = arith.constant 0 : index
    %46 = vector.load %arg4[%c4, %c0_24] : memref<8x256xf32, #tpu.memory_space<vmem>>, vector<1x256xf32>
    %47 = vector.broadcast %46 : vector<1x256xf32> to vector<8x256xf32>
    %48 = arith.addf %45, %47 : vector<8x256xf32>
    %cst_25 = arith.constant 0.000000e+00 : f32
    %49 = vector.broadcast %cst_25 : f32 to vector<8x256xf32>
    %50 = arith.maximumf %48, %49 : vector<8x256xf32>
    %51 = arith.truncf %50 : vector<8x256xf32> to vector<8x256xbf16>
    %c768 = arith.constant 768 : index
    %c0_26 = arith.constant 0 : index
    %52 = vector.load %arg3[%c768, %c0_26] : memref<1024x256xbf16, #tpu.memory_space<vmem>>, vector<256x128xbf16>
    %cst_27 = arith.constant dense<0.000000e+00> : vector<8x128xf32>
    %53 = tpu.matmul %51, %52, %cst_27 {dimension_numbers = #tpu.dot_dimension_numbers<[1], [0], [0], [1], [0, 0, 1, 1], [], []>} : vector<8x256xbf16>, vector<256x128xbf16>, vector<8x128xf32> -> vector<8x128xf32>
    %c5 = arith.constant 5 : index
    %c0_28 = arith.constant 0 : index
    %54 = vector.load %arg4[%c5, %c0_28] : memref<8x256xf32, #tpu.memory_space<vmem>>, vector<1x128xf32>
    %55 = vector.broadcast %54 : vector<1x128xf32> to vector<8x128xf32>
    %56 = arith.addf %53, %55 : vector<8x128xf32>
    %cst_29 = arith.constant 5.000000e-01 : f32
    %57 = vector.broadcast %cst_29 : f32 to vector<8x128xf32>
    %58 = arith.mulf %57, %56 : vector<8x128xf32>
    %59 = math.tanh %58 : vector<8x128xf32>
    %cst_30 = arith.constant 1.000000e+00 : f32
    %60 = vector.broadcast %cst_30 : f32 to vector<8x128xf32>
    %61 = arith.addf %59, %60 : vector<8x128xf32>
    %cst_31 = arith.constant 5.000000e-01 : f32
    %62 = vector.broadcast %cst_31 : f32 to vector<8x128xf32>
    %63 = arith.mulf %62, %61 : vector<8x128xf32>
    %c8_i32 = arith.constant 8 : i32
    %64 = tpu.dynamic_rotate %24 by %c8_i32 dim 1 : vector<8x128xf32>, i32 -> vector<8x128xf32>
    %65 = arith.addf %32, %64 : vector<8x128xf32>
    %c16_i32 = arith.constant 16 : i32
    %66 = tpu.dynamic_rotate %25 by %c16_i32 dim 1 : vector<8x128xf32>, i32 -> vector<8x128xf32>
    %67 = arith.addf %65, %66 : vector<8x128xf32>
    %c0_32 = arith.constant 0 : index
    %c0_33 = arith.constant 0 : index
    %68 = vector.load %arg5[%c0_32, %c0_33] : memref<8x256xf32, #tpu.memory_space<vmem>>, vector<8x128xf32>
    tpu.vector_store %arg5[%c0_32, %c0_33], %67 {strides = array<i32>} : memref<8x256xf32, #tpu.memory_space<vmem>>, vector<8x128xf32>,
    %c0_34 = arith.constant 0 : index
    %c128_35 = arith.constant 128 : index
    %69 = vector.load %arg5[%c0_34, %c128_35] : memref<8x256xf32, #tpu.memory_space<vmem>>, vector<8x128xf32>
    tpu.vector_store %arg5[%c0_34, %c128_35], %63 {strides = array<i32>} : memref<8x256xf32, #tpu.memory_space<vmem>>, vector<8x128xf32>,
    return
  }
  func.func @transform_0(%arg0: i32) -> (i32, i32) {
    %c0_i32 = arith.constant 0 : i32
    %c0_i32_0 = arith.constant 0 : i32
    return %arg0, %c0_i32 : i32, i32
  }
  func.func @transform_1(%arg0: i32) -> (i32, i32) {
    %c0_i32 = arith.constant 0 : i32
    %c0_i32_0 = arith.constant 0 : i32
    return %arg0, %c0_i32 : i32, i32
  }
  func.func @transform_2(%arg0: i32) -> (i32, i32) {
    %c0_i32 = arith.constant 0 : i32
    %c0_i32_0 = arith.constant 0 : i32
    %c0_i32_1 = arith.constant 0 : i32
    return %c0_i32, %c0_i32_0 : i32, i32
  }
  func.func @transform_3(%arg0: i32) -> (i32, i32) {
    %c0_i32 = arith.constant 0 : i32
    %c0_i32_0 = arith.constant 0 : i32
    %c0_i32_1 = arith.constant 0 : i32
    return %c0_i32, %c0_i32_0 : i32, i32
  }
  func.func @transform_4(%arg0: i32) -> (i32, i32) {
    %c0_i32 = arith.constant 0 : i32
    %c0_i32_0 = arith.constant 0 : i32
    return %arg0, %c0_i32 : i32, i32
  }
}

</mosaic_0001>

<llo_original>
// kernel: tpu_custom_call.1
$region0: #{tpu_custom_call.1}
  #allocation0 [shape = 'u32[]', space=smem, size = 0x4, offset = 0x4, fixed_abs, tag = 'smem constant byte address 0x4 - core index']
  #allocation1 [shape = 'u32[144,128]{1,0:T(1,128)}', space=vmem, size = 0x12000, scoped, tag = 'internal scratch']
  %s0 = inlined_call_operand.hbm [shape: f32[8,64], index: 0, kind: input, shape index: {}]
  %s1 = inlined_call_operand.hbm [shape: f32[8,8], index: 1, kind: input, shape index: {}]
  %s2 = inlined_call_operand.hbm [shape: bf16[1024,256], index: 2, kind: input, shape index: {}]
  %s3 = inlined_call_operand.hbm [shape: f32[8,256], index: 3, kind: input, shape index: {}]
  %s4 = inlined_call_operand.hbm [shape: f32[8,256], index: 4, kind: output, shape index: {}]
  %s5 = sld [smem:[#allocation0]]
  $region42: #{tpu_custom_call.1} parent=0
    _
  %s7 = ssub.s32 1, %s5
  %s8 = scalar_select 0, %s7, %s5
  $region1: #{tpu_custom_call.1} parent=0
    #allocation2 [shape = 'u8[4096]{0}', space=vmem, size = 0x1000, scoped, tag = 'input window, operand 0, single buffered']
    #allocation3 [shape = 's32[1]{0}', space=sflag, size = 0x4, scoped, tag = 'scoped memory for tpu_custom_call.1']
    #allocation4 [shape = 's32[1]{0}', space=sflag, size = 0x4, scoped, tag = 'scoped memory for tpu_custom_call.1']
    #allocation5 [shape = 'u8[4096]{0}', space=vmem, size = 0x1000, scoped, tag = 'input window, operand 1, single buffered']
    #allocation6 [shape = 's32[1]{0}', space=sflag, size = 0x4, scoped, tag = 'scoped memory for tpu_custom_call.1']
    #allocation7 [shape = 'u8[524288]{0}', space=vmem, size = 0x80000, scoped, tag = 'input window, operand 2, single buffered']
    #allocation8 [shape = 'u8[8192]{0}', space=vmem, size = 0x2000, scoped, tag = 'input window, operand 3, single buffered']
    #allocation9 [shape = 's32[1]{0}', space=sflag, size = 0x4, scoped, tag = 'scoped memory for tpu_custom_call.1']
    #allocation10 [shape = 'u8[8192]{0}', space=vmem, size = 0x2000, scoped, tag = 'output window, operand 0, single buffered']
    %9 = vsyncpa [#allocation3], 0
    %10 = vsyncpa [#allocation6], 0
    %11 = vsyncpa [#allocation9], 0
    %12 = vsyncpa [#allocation4], 0
    // Predicated region
    $region2: #{tpu_custom_call.1} parent=1 // pred_check
      _
    $region3: #{tpu_custom_call.1} parent=1 // pred_check_branch
      %14 = sbr.rel (0) target = $region5
    $region4: #{tpu_custom_call.1} parent=1 // pred_region
      %s16 = ssub.s32 128, 128
      %17 = vsyncadd [#allocation3], %s16
      %s19 = sshll.u32 [#allocation2], 4
      %s20 = int_to_ptr.vmem [resolvable:$true] %s19
      %22 = dma.hbm_to_vmem [thread:$0]  %s0, 128, %s20, [#allocation3]
    $region5: #{tpu_custom_call.1} parent=1 // pred_fallthru
      _
    // Predicated region
    $region6: #{tpu_custom_call.1} parent=1 // pred_check
      _
    $region7: #{tpu_custom_call.1} parent=1 // pred_check_branch
      %24 = sbr.rel (0) target = $region9
    $region8: #{tpu_custom_call.1} parent=1 // pred_region
      %s26 = ssub.s32 128, 128
      %27 = vsyncadd [#allocation6], %s26
      %s29 = sshll.u32 [#allocation5], 4
      %s30 = int_to_ptr.vmem [resolvable:$true] %s29
      %32 = dma.hbm_to_vmem [thread:$0]  %s1, 128, %s30, [#allocation6]
    $region9: #{tpu_custom_call.1} parent=1 // pred_fallthru
      _
    // Predicated region
    $region10: #{tpu_custom_call.1} parent=1 // pred_check
      _
    $region11: #{tpu_custom_call.1} parent=1 // pred_check_branch
      %34 = sbr.rel (0) target = $region13
    $region12: #{tpu_custom_call.1} parent=1 // pred_region
      %s36 = ssub.s32 16384, 16384
      %37 = vsyncadd [#allocation6], %s36
      %s38 = sshll.u32 [#allocation7], 4
      %s39 = int_to_ptr.vmem [resolvable:$true] %s38
      %44 = dma.hbm_to_vmem [thread:$0]  %s2, 16384, %s39, [#allocation6], 128, 128, 8
    $region13: #{tpu_custom_call.1} parent=1 // pred_fallthru
      _
    // Predicated region
    $region14: #{tpu_custom_call.1} parent=1 // pred_check
      _
    $region15: #{tpu_custom_call.1} parent=1 // pred_check_branch
      %46 = sbr.rel (0) target = $region17
    $region16: #{tpu_custom_call.1} parent=1 // pred_region
      %s48 = ssub.s32 256, 256
      %49 = vsyncadd [#allocation9], %s48
      %s51 = sshll.u32 [#allocation8], 4
      %s52 = int_to_ptr.vmem [resolvable:$true] %s51
      %54 = dma.hbm_to_vmem [thread:$0]  %s3, 256, %s52, [#allocation9]
    $region17: #{tpu_custom_call.1} parent=1 // pred_fallthru
      _
    // Predicated region
    $region18: #{tpu_custom_call.1} parent=1 // pred_check
      _
    $region19: #{tpu_custom_call.1} parent=1 // pred_check_branch
      %56 = sbr.rel (0) target = $region21
    $region20: #{tpu_custom_call.1} parent=1 // pred_region
      %57 = dma.done [#allocation3], 128
    $region21: #{tpu_custom_call.1} parent=1 // pred_fallthru
      _
    // Predicated region
    $region22: #{tpu_custom_call.1} parent=1 // pred_check
      _
    $region23: #{tpu_custom_call.1} parent=1 // pred_check_branch
      %59 = sbr.rel (0) target = $region25
    $region24: #{tpu_custom_call.1} parent=1 // pred_region
      %60 = dma.done [#allocation6], 128
    $region25: #{tpu_custom_call.1} parent=1 // pred_fallthru
      _
    // Predicated region
    $region26: #{tpu_custom_call.1} parent=1 // pred_check
      _
    $region27: #{tpu_custom_call.1} parent=1 // pred_check_branch
      %62 = sbr.rel (0) target = $region29
    $region28: #{tpu_custom_call.1} parent=1 // pred_region
      %63 = dma.done [#allocation6], 16384
    $region29: #{tpu_custom_call.1} parent=1 // pred_fallthru
      _
    // Predicated region
    $region30: #{tpu_custom_call.1} parent=1 // pred_check
      _
    $region31: #{tpu_custom_call.1} parent=1 // pred_check_branch
      %65 = sbr.rel (0) target = $region33
    $region32: #{tpu_custom_call.1} parent=1 // pred_region
      %66 = dma.done [#allocation9], 256
    $region33: #{tpu_custom_call.1} parent=1 // pred_fallthru
      _
    %v68 = vld [vmem:[#allocation2] sm:$0xff]
    %v69 = vld [vmem:[#allocation5] sm:$0xff]
    %v70 = vpack.c.bf16 %v68, %v68
    %v71 = vld [vmem:[#allocation7] sm:$0xff]
    %v72 = vld [vmem:[#allocation7 + $0x8] sm:$0xff]
    %v73 = vld [vmem:[#allocation7 + $0x10] sm:$0xff]
    %v74 = vld [vmem:[#allocation7 + $0x18] sm:$0xff]
    %v75 = vld [vmem:[#allocation7 + $0x20] sm:$0xff]
    %v76 = vld [vmem:[#allocation7 + $0x28] sm:$0xff]
    %v77 = vld [vmem:[#allocation7 + $0x30] sm:$0xff]
    %v78 = vld [vmem:[#allocation7 + $0x38] sm:$0xff]
    %v79 = vld [vmem:[#allocation8] ss:$8 sm:$0x3]
    %v81 = vlaneseq
    %v82 = vshrl.u32 %v81, 7
    %v83 = vsub.s32 0, %v82
    %v84 = vrot.slane %v79, %v83
    %v85 = vlaneseq
    %v86 = vshrl.u32 %v85, 7
    %v87 = vsub.s32 1, %v86
    %v88 = vrot.slane %v79, %v87
    %v99 = vunpack.c.l.b16 %v71
    %v100 = vunpack.c.h.b16 %v71
    %v101 = vunpack.c.l.b16 %v72
    %v102 = vunpack.c.h.b16 %v72
    %v103 = vunpack.c.l.b16 %v73
    %v104 = vunpack.c.h.b16 %v73
    %v105 = vunpack.c.l.b16 %v74
    %v106 = vunpack.c.h.b16 %v74
    %v107 = vunpack.c.l.b16 %v75
    %v108 = vunpack.c.h.b16 %v75
    %v109 = vunpack.c.l.b16 %v76
    %v110 = vunpack.c.h.b16 %v76
    %v111 = vunpack.c.l.b16 %v77
    %v112 = vunpack.c.h.b16 %v77
    %v113 = vunpack.c.l.b16 %v78
    %v114 = vunpack.c.h.b16 %v78
    %v115 = vpack.c.b16 %v101, %v99
    %v116 = vpack.c.b16 %v102, %v100
    %v117 = vpack.c.b16 %v105, %v103
    %v118 = vpack.c.b16 %v106, %v104
    %v119 = vpack.c.b16 %v109, %v107
    %v120 = vpack.c.b16 %v110, %v108
    %v121 = vpack.c.b16 %v113, %v111
    %v122 = vpack.c.b16 %v114, %v112
    %vm131 = vcmask 523264
    %v133 = vsel %vm131, %v70, 0
    %135 = vmatprep.subr.bf16.mxu0 %v116
    %136 = vmatpush1.bf16.msra.mxu0 %v115
    %137 = vmatprep.subr.bf16.mxu0 %v118
    %138 = vmatpush1.bf16.msra.mxu0 %v117
    %139 = vmatprep.subr.bf16.mxu0 %v120
    %140 = vmatpush1.bf16.msra.mxu0 %v119
    %141 = vmatprep.subr.bf16.mxu0 %v122
    %142 = vmatpush1.bf16.msra.mxu0 %v121
    %143 = vmatprep.subr.bf16.mxu0 0
    %144 = vmatpush1.bf16.msra.mxu0 0
    %145 = vmatprep.subr.bf16.mxu0 0
    %146 = vmatpush1.bf16.msra.mxu0 0
    %147 = vmatprep.subr.bf16.mxu0 0
    %148 = vmatpush1.bf16.msra.mxu0 0
    %149 = vmatprep.subr.bf16.mxu0 0
    %150 = vmatpush1.bf16.msra.mxu0 0
    %151 = vmatprep.subr.bf16.mxu0 0
    %152 = vmatpush1.bf16.msra.mxu0 0
    %153 = vmatprep.subr.bf16.mxu0 0
    %154 = vmatpush1.bf16.msra.mxu0 0
    %155 = vmatprep.subr.bf16.mxu0 0
    %156 = vmatpush1.bf16.msra.mxu0 0
    %157 = vmatprep.subr.bf16.mxu0 0
    %158 = vmatpush1.bf16.msra.mxu0 0
    %159 = vmatprep.subr.bf16.mxu0 0
    %160 = vmatpush1.bf16.msra.mxu0 0
    %161 = vmatprep.subr.bf16.mxu0 0
    %162 = vmatpush1.bf16.msra.mxu0 0
    %163 = vmatprep.subr.bf16.mxu0 0
    %164 = vmatpush1.bf16.msra.mxu0 0
    %165 = vmatprep.subr.bf16.mxu0 0
    %166 = vmatpush1.bf16.msra.mxu0 0
    %167 = vmatprep.mubr.bf16.mxu0 0
    %168 = vmatmul.mubr.bf16.gmra.mrb[0].mxu0 %v133
    %v169 = vpop.f32.mrb[0].mxu0
    %v170 = vadd.f32 %v84, %v169
    %v171 = vpop.f32.mrb[0].mxu0
    %v172 = vadd.f32 %v88, %v171
    %v173 = vpop.f32.mrb[0].mxu0
    %v174 = vpop.f32.mrb[0].mxu0
    %175 = vdwg.mxu0
    %v176 = vmax.f32 %v170, 0.0
    %v177 = vmax.f32 %v172, 0.0
    %v178 = vpack.c.bf16 %v176, %v176
    %v179 = vpack.c.bf16 %v177, %v177
    %v180 = vld [vmem:[#allocation7 + $0x80] sm:$0xf]
    %v181 = vld [vmem:[#allocation7 + $0x88] sm:$0xf]
    %v182 = vld [vmem:[#allocation7 + $0x90] sm:$0xf]
    %v183 = vld [vmem:[#allocation7 + $0x98] sm:$0xf]
    %v184 = vld [vmem:[#allocation7 + $0xa0] sm:$0xf]
    %v185 = vld [vmem:[#allocation7 + $0xa8] sm:$0xf]
    %v186 = vld [vmem:[#allocation7 + $0xb0] sm:$0xf]
    %v187 = vld [vmem:[#allocation7 + $0xb8] sm:$0xf]
    %v188 = vld [vmem:[#allocation7 + $0xc0] sm:$0xf]
    %v189 = vld [vmem:[#allocation7 + $0xc8] sm:$0xf]
    %v190 = vld [vmem:[#allocation7 + $0xd0] sm:$0xf]
    %v191 = vld [vmem:[#allocation7 + $0xd8] sm:$0xf]
    %v192 = vld [vmem:[#allocation7 + $0xe0] sm:$0xf]
    %v193 = vld [vmem:[#allocation7 + $0xe8] sm:$0xf]
    %v194 = vld [vmem:[#allocation7 + $0xf0] sm:$0xf]
    %v195 = vld [vmem:[#allocation7 + $0xf8] sm:$0xf]
    %v196 = vld [vmem:[#allocation7 + $0x100] sm:$0xf]
    %v197 = vld [vmem:[#allocation7 + $0x108] sm:$0xf]
    %v198 = vld [vmem:[#allocation7 + $0x110] sm:$0xf]
    %v199 = vld [vmem:[#allocation7 + $0x118] sm:$0xf]
    %v200 = vld [vmem:[#allocation7 + $0x120] sm:$0xf]
    %v201 = vld [vmem:[#allocation7 + $0x128] sm:$0xf]
    %v202 = vld [vmem:[#allocation7 + $0x130] sm:$0xf]
    %v203 = vld [vmem:[#allocation7 + $0x138] sm:$0xf]
    %v204 = vld [vmem:[#allocation7 + $0x140] sm:$0xf]
    %v205 = vld [vmem:[#allocation7 + $0x148] sm:$0xf]
    %v206 = vld [vmem:[#allocation7 + $0x150] sm:$0xf]
    %v207 = vld [vmem:[#allocation7 + $0x158] sm:$0xf]
    %v208 = vld [vmem:[#allocation7 + $0x160] sm:$0xf]
    %v209 = vld [vmem:[#allocation7 + $0x168] sm:$0xf]
    %v210 = vld [vmem:[#allocation7 + $0x170] sm:$0xf]
    %v211 = vld [vmem:[#allocation7 + $0x178] sm:$0xf]
    %v212 = vld [vmem:[#allocation8 + $0x1] ss:$0 sm:$0xff]
    %v245 = vunpack.c.l.b16 %v180
    %v246 = vunpack.c.l.b16 %v181
    %v247 = vunpack.c.l.b16 %v182
    %v248 = vunpack.c.l.b16 %v183
    %v249 = vunpack.c.l.b16 %v184
    %v250 = vunpack.c.l.b16 %v185
    %v251 = vunpack.c.l.b16 %v186
    %v252 = vunpack.c.l.b16 %v187
    %v253 = vunpack.c.l.b16 %v188
    %v254 = vunpack.c.l.b16 %v189
    %v255 = vunpack.c.l.b16 %v190
    %v256 = vunpack.c.l.b16 %v191
    %v257 = vunpack.c.l.b16 %v192
    %v258 = vunpack.c.l.b16 %v193
    %v259 = vunpack.c.l.b16 %v194
    %v260 = vunpack.c.l.b16 %v195
    %v261 = vunpack.c.l.b16 %v196
    %v262 = vunpack.c.l.b16 %v197
    %v263 = vunpack.c.l.b16 %v198
    %v264 = vunpack.c.l.b16 %v199
    %v265 = vunpack.c.l.b16 %v200
    %v266 = vunpack.c.l.b16 %v201
    %v267 = vunpack.c.l.b16 %v202
    %v268 = vunpack.c.l.b16 %v203
    %v269 = vunpack.c.l.b16 %v204
    %v270 = vunpack.c.l.b16 %v205
    %v271 = vunpack.c.l.b16 %v206
    %v272 = vunpack.c.l.b16 %v207
    %v273 = vunpack.c.l.b16 %v208
    %v274 = vunpack.c.l.b16 %v209
    %v275 = vunpack.c.l.b16 %v210
    %v276 = vunpack.c.l.b16 %v211
    %v277 = vpack.c.b16 %v246, %v245
    %v278 = vpack.c.b16 %v248, %v247
    %v279 = vpack.c.b16 %v250, %v249
    %v280 = vpack.c.b16 %v252, %v251
    %v281 = vpack.c.b16 %v254, %v253
    %v282 = vpack.c.b16 %v256, %v255
    %v283 = vpack.c.b16 %v258, %v257
    %v284 = vpack.c.b16 %v260, %v259
    %v285 = vpack.c.b16 %v262, %v261
    %v286 = vpack.c.b16 %v264, %v263
    %v287 = vpack.c.b16 %v266, %v265
    %v288 = vpack.c.b16 %v268, %v267
    %v289 = vpack.c.b16 %v270, %v269
    %v290 = vpack.c.b16 %v272, %v271
    %v291 = vpack.c.b16 %v274, %v273
    %v292 = vpack.c.b16 %v276, %v275
    %309 = vmatprep.subr.bf16.mxu0 0
    %310 = vmatpush1.bf16.msra.mxu0 %v277
    %311 = vmatprep.subr.bf16.mxu0 0
    %312 = vmatpush1.bf16.msra.mxu0 %v278
    %313 = vmatprep.subr.bf16.mxu0 0
    %314 = vmatpush1.bf16.msra.mxu0 %v279
    %315 = vmatprep.subr.bf16.mxu0 0
    %316 = vmatpush1.bf16.msra.mxu0 %v280
    %317 = vmatprep.subr.bf16.mxu0 0
    %318 = vmatpush1.bf16.msra.mxu0 %v281
    %319 = vmatprep.subr.bf16.mxu0 0
    %320 = vmatpush1.bf16.msra.mxu0 %v282
    %321 = vmatprep.subr.bf16.mxu0 0
    %322 = vmatpush1.bf16.msra.mxu0 %v283
    %323 = vmatprep.subr.bf16.mxu0 0
    %324 = vmatpush1.bf16.msra.mxu0 %v284
    %325 = vmatprep.subr.bf16.mxu0 0
    %326 = vmatpush1.bf16.msra.mxu0 %v285
    %327 = vmatprep.subr.bf16.mxu0 0
    %328 = vmatpush1.bf16.msra.mxu0 %v286
    %329 = vmatprep.subr.bf16.mxu0 0
    %330 = vmatpush1.bf16.msra.mxu0 %v287
    %331 = vmatprep.subr.bf16.mxu0 0
    %332 = vmatpush1.bf16.msra.mxu0 %v288
    %333 = vmatprep.subr.bf16.mxu0 0
    %334 = vmatpush1.bf16.msra.mxu0 %v289
    %335 = vmatprep.subr.bf16.mxu0 0
    %336 = vmatpush1.bf16.msra.mxu0 %v290
    %337 = vmatprep.subr.bf16.mxu0 0
    %338 = vmatpush1.bf16.msra.mxu0 %v291
    %339 = vmatprep.subr.bf16.mxu0 0
    %340 = vmatpush1.bf16.msra.mxu0 %v292
    %341 = vmatprep.mubr.bf16.mxu0 %v179
    %342 = vmatmul.mubr.bf16.gmra.mrb[0].mxu0 %v178
    %v343 = vpop.f32.mrb[0].mxu0
    %v344 = vadd.f32 %v212, %v343
    %v345 = vpop.f32.mrb[0].mxu0
    %v346 = vpop.f32.mrb[0].mxu0
    %v347 = vpop.f32.mrb[0].mxu0
    %348 = vdwg.mxu0
    %v349 = vmax.f32 %v344, 0.0
    %v350 = vpack.c.bf16 %v349, %v349
    %v351 = vld [vmem:[#allocation7 + $0x180] sm:$0xff]
    %v352 = vld [vmem:[#allocation7 + $0x188] sm:$0xff]
    %v353 = vld [vmem:[#allocation7 + $0x190] sm:$0xff]
    %v354 = vld [vmem:[#allocation7 + $0x198] sm:$0xff]
    %v355 = vld [vmem:[#allocation7 + $0x1a0] sm:$0xff]
    %v356 = vld [vmem:[#allocation7 + $0x1a8] sm:$0xff]
    %v357 = vld [vmem:[#allocation7 + $0x1b0] sm:$0xff]
    %v358 = vld [vmem:[#allocation7 + $0x1b8] sm:$0xff]
    %v359 = vld [vmem:[#allocation7 + $0x1c0] sm:$0xff]
    %v360 = vld [vmem:[#allocation7 + $0x1c8] sm:$0xff]
    %v361 = vld [vmem:[#allocation7 + $0x1d0] sm:$0xff]
    %v362 = vld [vmem:[#allocation7 + $0x1d8] sm:$0xff]
    %v363 = vld [vmem:[#allocation7 + $0x1e0] sm:$0xff]
    %v364 = vld [vmem:[#allocation7 + $0x1e8] sm:$0xff]
    %v365 = vld [vmem:[#allocation7 + $0x1f0] sm:$0xff]
    %v366 = vld [vmem:[#allocation7 + $0x1f8] sm:$0xff]
    %s367 = scalar_lea.vmem [#allocation8], 2
    %v368 = vld [vmem:[%s367] ss:$8 sm:$0x3]
    %v370 = vlaneseq
    %v371 = vshrl.u32 %v370, 7
    %v372 = vsub.s32 0, %v371
    %v373 = vrot.slane %v368, %v372
    %v374 = vlaneseq
    %v375 = vshrl.u32 %v374, 7
    %v376 = vsub.s32 1, %v375
    %v377 = vrot.slane %v368, %v376
    %v396 = vunpack.c.l.b16 %v351
    %v397 = vunpack.c.h.b16 %v351
    %v398 = vunpack.c.l.b16 %v352
    %v399 = vunpack.c.h.b16 %v352
    %v400 = vunpack.c.l.b16 %v353
    %v401 = vunpack.c.h.b16 %v353
    %v402 = vunpack.c.l.b16 %v354
    %v403 = vunpack.c.h.b16 %v354
    %v404 = vunpack.c.l.b16 %v355
    %v405 = vunpack.c.h.b16 %v355
    %v406 = vunpack.c.l.b16 %v356
    %v407 = vunpack.c.h.b16 %v356
    %v408 = vunpack.c.l.b16 %v357
    %v409 = vunpack.c.h.b16 %v357
    %v410 = vunpack.c.l.b16 %v358
    %v411 = vunpack.c.h.b16 %v358
    %v412 = vunpack.c.l.b16 %v359
    %v413 = vunpack.c.h.b16 %v359
    %v414 = vunpack.c.l.b16 %v360
    %v415 = vunpack.c.h.b16 %v360
    %v416 = vunpack.c.l.b16 %v361
    %v417 = vunpack.c.h.b16 %v361
    %v418 = vunpack.c.l.b16 %v362
    %v419 = vunpack.c.h.b16 %v362
    %v420 = vunpack.c.l.b16 %v363
    %v421 = vunpack.c.h.b16 %v363
    %v422 = vunpack.c.l.b16 %v364
    %v423 = vunpack.c.h.b16 %v364
    %v424 = vunpack.c.l.b16 %v365
    %v425 = vunpack.c.h.b16 %v365
    %v426 = vunpack.c.l.b16 %v366
    %v427 = vunpack.c.h.b16 %v366
    %v428 = vpack.c.b16 %v398, %v396
    %v429 = vpack.c.b16 %v399, %v397
    %v430 = vpack.c.b16 %v402, %v400
    %v431 = vpack.c.b16 %v403, %v401
    %v432 = vpack.c.b16 %v406, %v404
    %v433 = vpack.c.b16 %v407, %v405
    %v434 = vpack.c.b16 %v410, %v408
    %v435 = vpack.c.b16 %v411, %v409
    %v436 = vpack.c.b16 %v414, %v412
    %v437 = vpack.c.b16 %v415, %v413
    %v438 = vpack.c.b16 %v418, %v416
    %v439 = vpack.c.b16 %v419, %v417
    %v440 = vpack.c.b16 %v422, %v420
    %v441 = vpack.c.b16 %v423, %v421
    %v442 = vpack.c.b16 %v426, %v424
    %v443 = vpack.c.b16 %v427, %v425
    %460 = vmatprep.subr.bf16.mxu0 %v429
    %461 = vmatpush1.bf16.msra.mxu0 %v428
    %462 = vmatprep.subr.bf16.mxu0 %v431
    %463 = vmatpush1.bf16.msra.mxu0 %v430
    %464 = vmatprep.subr.bf16.mxu0 %v433
    %465 = vmatpush1.bf16.msra.mxu0 %v432
    %466 = vmatprep.subr.bf16.mxu0 %v435
    %467 = vmatpush1.bf16.msra.mxu0 %v434
    %468 = vmatprep.subr.bf16.mxu0 %v437
    %469 = vmatpush1.bf16.msra.mxu0 %v436
    %470 = vmatprep.subr.bf16.mxu0 %v439
    %471 = vmatpush1.bf16.msra.mxu0 %v438
    %472 = vmatprep.subr.bf16.mxu0 %v441
    %473 = vmatpush1.bf16.msra.mxu0 %v440
    %474 = vmatprep.subr.bf16.mxu0 %v443
    %475 = vmatpush1.bf16.msra.mxu0 %v442
    %476 = vmatprep.subr.bf16.mxu0 0
    %477 = vmatpush1.bf16.msra.mxu0 0
    %478 = vmatprep.subr.bf16.mxu0 0
    %479 = vmatpush1.bf16.msra.mxu0 0
    %480 = vmatprep.subr.bf16.mxu0 0
    %481 = vmatpush1.bf16.msra.mxu0 0
    %482 = vmatprep.subr.bf16.mxu0 0
    %483 = vmatpush1.bf16.msra.mxu0 0
    %484 = vmatprep.subr.bf16.mxu0 0
    %485 = vmatpush1.bf16.msra.mxu0 0
    %486 = vmatprep.subr.bf16.mxu0 0
    %487 = vmatpush1.bf16.msra.mxu0 0
    %488 = vmatprep.subr.bf16.mxu0 0
    %489 = vmatpush1.bf16.msra.mxu0 0
    %490 = vmatprep.subr.bf16.mxu0 0
    %491 = vmatpush1.bf16.msra.mxu0 0
    %492 = vmatprep.mubr.bf16.mxu0 0
    %493 = vmatmul.mubr.bf16.gmra.mrb[0].mxu0 %v350
    %v494 = vpop.f32.mrb[0].mxu0
    %v495 = vadd.f32 %v373, %v494
    %v496 = vpop.f32.mrb[0].mxu0
    %v497 = vadd.f32 %v377, %v496
    %v498 = vpop.f32.mrb[0].mxu0
    %v499 = vpop.f32.mrb[0].mxu0
    %500 = vdwg.mxu0
    %vm501 = vcmask 64512
    %v502 = vsel %vm501, %v69, 0.0
    %v503 = vmul.f32 %v497, 0.5
    %v504 = vmul.f32 %v503, 1.442695
    %v505 = vpow.pop %v504
    %v506 = vmul.f32 %v502, %v505
    %v507 = vadd.f32 %v495, %v506
    %v508 = vmax.f32 %v507, 0.0
    %v509 = vpack.c.bf16 %v508, %v508
    %v510 = vld [vmem:[#allocation7 + $0x200] sm:$0xf]
    %v511 = vld [vmem:[#allocation7 + $0x208] sm:$0xf]
    %v512 = vld [vmem:[#allocation7 + $0x210] sm:$0xf]
    %v513 = vld [vmem:[#allocation7 + $0x218] sm:$0xf]
    %v514 = vld [vmem:[#allocation7 + $0x220] sm:$0xf]
    %v515 = vld [vmem:[#allocation7 + $0x228] sm:$0xf]
    %v516 = vld [vmem:[#allocation7 + $0x230] sm:$0xf]
    %v517 = vld [vmem:[#allocation7 + $0x238] sm:$0xf]
    %v518 = vld [vmem:[#allocation7 + $0x240] sm:$0xf]
    %v519 = vld [vmem:[#allocation7 + $0x248] sm:$0xf]
    %v520 = vld [vmem:[#allocation7 + $0x250] sm:$0xf]
    %v521 = vld [vmem:[#allocation7 + $0x258] sm:$0xf]
    %v522 = vld [vmem:[#allocation7 + $0x260] sm:$0xf]
    %v523 = vld [vmem:[#allocation7 + $0x268] sm:$0xf]
    %v524 = vld [vmem:[#allocation7 + $0x270] sm:$0xf]
    %v525 = vld [vmem:[#allocation7 + $0x278] sm:$0xf]
    %v526 = vld [vmem:[#allocation8 + $0x3] ss:$0 sm:$0xff]
    %v543 = vunpack.c.l.b16 %v510
    %v544 = vunpack.c.l.b16 %v511
    %v545 = vunpack.c.l.b16 %v512
    %v546 = vunpack.c.l.b16 %v513
    %v547 = vunpack.c.l.b16 %v514
    %v548 = vunpack.c.l.b16 %v515
    %v549 = vunpack.c.l.b16 %v516
    %v550 = vunpack.c.l.b16 %v517
    %v551 = vunpack.c.l.b16 %v518
    %v552 = vunpack.c.l.b16 %v519
    %v553 = vunpack.c.l.b16 %v520
    %v554 = vunpack.c.l.b16 %v521
    %v555 = vunpack.c.l.b16 %v522
    %v556 = vunpack.c.l.b16 %v523
    %v557 = vunpack.c.l.b16 %v524
    %v558 = vunpack.c.l.b16 %v525
    %v559 = vpack.c.b16 %v544, %v543
    %v560 = vpack.c.b16 %v546, %v545
    %v561 = vpack.c.b16 %v548, %v547
    %v562 = vpack.c.b16 %v550, %v549
    %v563 = vpack.c.b16 %v552, %v551
    %v564 = vpack.c.b16 %v554, %v553
    %v565 = vpack.c.b16 %v556, %v555
    %v566 = vpack.c.b16 %v558, %v557
    %575 = vmatprep.subr.bf16.mxu0 0
    %576 = vmatpush1.bf16.msra.mxu0 %v559
    %577 = vmatprep.subr.bf16.mxu0 0
    %578 = vmatpush1.bf16.msra.mxu0 %v560
    %579 = vmatprep.subr.bf16.mxu0 0
    %580 = vmatpush1.bf16.msra.mxu0 %v561
    %581 = vmatprep.subr.bf16.mxu0 0
    %582 = vmatpush1.bf16.msra.mxu0 %v562
    %583 = vmatprep.subr.bf16.mxu0 0
    %584 = vmatpush1.bf16.msra.mxu0 %v563
    %585 = vmatprep.subr.bf16.mxu0 0
    %586 = vmatpush1.bf16.msra.mxu0 %v564
    %587 = vmatprep.subr.bf16.mxu0 0
    %588 = vmatpush1.bf16.msra.mxu0 %v565
    %589 = vmatprep.subr.bf16.mxu0 0
    %590 = vmatpush1.bf16.msra.mxu0 %v566
    %591 = vmatprep.subr.bf16.mxu0 0
    %592 = vmatpush1.bf16.msra.mxu0 0
    %593 = vmatprep.subr.bf16.mxu0 0
    %594 = vmatpush1.bf16.msra.mxu0 0
    %595 = vmatprep.subr.bf16.mxu0 0
    %596 = vmatpush1.bf16.msra.mxu0 0
    %597 = vmatprep.subr.bf16.mxu0 0
    %598 = vmatpush1.bf16.msra.mxu0 0
    %599 = vmatprep.subr.bf16.mxu0 0
    %600 = vmatpush1.bf16.msra.mxu0 0
    %601 = vmatprep.subr.bf16.mxu0 0
    %602 = vmatpush1.bf16.msra.mxu0 0
    %603 = vmatprep.subr.bf16.mxu0 0
    %604 = vmatpush1.bf16.msra.mxu0 0
    %605 = vmatprep.subr.bf16.mxu0 0
    %606 = vmatpush1.bf16.msra.mxu0 0
    %607 = vmatprep.mubr.bf16.mxu0 0
    %608 = vmatmul.mubr.bf16.gmra.mrb[0].mxu0 %v509
    %v609 = vpop.f32.mrb[0].mxu0
    %v610 = vadd.f32 %v526, %v609
    %v611 = vpop.f32.mrb[0].mxu0
    %v612 = vpop.f32.mrb[0].mxu0
    %v613 = vpop.f32.mrb[0].mxu0
    %614 = vdwg.mxu0
    %v615 = vmax.f32 %v610, 0.0
    %v616 = vpack.c.bf16 %v615, %v615
    %v617 = vld [vmem:[#allocation7 + $0x280] sm:$0xff]
    %v618 = vld [vmem:[#allocation7 + $0x288] sm:$0xff]
    %v619 = vld [vmem:[#allocation7 + $0x290] sm:$0xff]
    %v620 = vld [vmem:[#allocation7 + $0x298] sm:$0xff]
    %v621 = vld [vmem:[#allocation7 + $0x2a0] sm:$0xff]
    %v622 = vld [vmem:[#allocation7 + $0x2a8] sm:$0xff]
    %v623 = vld [vmem:[#allocation7 + $0x2b0] sm:$0xff]
    %v624 = vld [vmem:[#allocation7 + $0x2b8] sm:$0xff]
    %v625 = vld [vmem:[#allocation7 + $0x2c0] sm:$0xff]
    %v626 = vld [vmem:[#allocation7 + $0x2c8] sm:$0xff]
    %v627 = vld [vmem:[#allocation7 + $0x2d0] sm:$0xff]
    %v628 = vld [vmem:[#allocation7 + $0x2d8] sm:$0xff]
    %v629 = vld [vmem:[#allocation7 + $0x2e0] sm:$0xff]
    %v630 = vld [vmem:[#allocation7 + $0x2e8] sm:$0xff]
    %v631 = vld [vmem:[#allocation7 + $0x2f0] sm:$0xff]
    %v632 = vld [vmem:[#allocation7 + $0x2f8] sm:$0xff]
    %s633 = scalar_lea.vmem [#allocation8], 4
    %v634 = vld [vmem:[%s633] ss:$8 sm:$0x3]
    %v636 = vlaneseq
    %v637 = vshrl.u32 %v636, 7
    %v638 = vsub.s32 0, %v637
    %v639 = vrot.slane %v634, %v638
    %v640 = vlaneseq
    %v641 = vshrl.u32 %v640, 7
    %v642 = vsub.s32 1, %v641
    %v643 = vrot.slane %v634, %v642
    %v662 = vunpack.c.l.b16 %v617
    %v663 = vunpack.c.h.b16 %v617
    %v664 = vunpack.c.l.b16 %v618
    %v665 = vunpack.c.h.b16 %v618
    %v666 = vunpack.c.l.b16 %v619
    %v667 = vunpack.c.h.b16 %v619
    %v668 = vunpack.c.l.b16 %v620
    %v669 = vunpack.c.h.b16 %v620
    %v670 = vunpack.c.l.b16 %v621
    %v671 = vunpack.c.h.b16 %v621
    %v672 = vunpack.c.l.b16 %v622
    %v673 = vunpack.c.h.b16 %v622
    %v674 = vunpack.c.l.b16 %v623
    %v675 = vunpack.c.h.b16 %v623
    %v676 = vunpack.c.l.b16 %v624
    %v677 = vunpack.c.h.b16 %v624
    %v678 = vunpack.c.l.b16 %v625
    %v679 = vunpack.c.h.b16 %v625
    %v680 = vunpack.c.l.b16 %v626
    %v681 = vunpack.c.h.b16 %v626
    %v682 = vunpack.c.l.b16 %v627
    %v683 = vunpack.c.h.b16 %v627
    %v684 = vunpack.c.l.b16 %v628
    %v685 = vunpack.c.h.b16 %v628
    %v686 = vunpack.c.l.b16 %v629
    %v687 = vunpack.c.h.b16 %v629
    %v688 = vunpack.c.l.b16 %v630
    %v689 = vunpack.c.h.b16 %v630
    %v690 = vunpack.c.l.b16 %v631
    %v691 = vunpack.c.h.b16 %v631
    %v692 = vunpack.c.l.b16 %v632
    %v693 = vunpack.c.h.b16 %v632
    %v694 = vpack.c.b16 %v664, %v662
    %v695 = vpack.c.b16 %v665, %v663
    %v696 = vpack.c.b16 %v668, %v666
    %v697 = vpack.c.b16 %v669, %v667
    %v698 = vpack.c.b16 %v672, %v670
    %v699 = vpack.c.b16 %v673, %v671
    %v700 = vpack.c.b16 %v676, %v674
    %v701 = vpack.c.b16 %v677, %v675
    %v702 = vpack.c.b16 %v680, %v678
    %v703 = vpack.c.b16 %v681, %v679
    %v704 = vpack.c.b16 %v684, %v682
    %v705 = vpack.c.b16 %v685, %v683
    %v706 = vpack.c.b16 %v688, %v686
    %v707 = vpack.c.b16 %v689, %v687
    %v708 = vpack.c.b16 %v692, %v690
    %v709 = vpack.c.b16 %v693, %v691
    %726 = vmatprep.subr.bf16.mxu0 %v695
    %727 = vmatpush1.bf16.msra.mxu0 %v694
    %728 = vmatprep.subr.bf16.mxu0 %v697
    %729 = vmatpush1.bf16.msra.mxu0 %v696
    %730 = vmatprep.subr.bf16.mxu0 %v699
    %731 = vmatpush1.bf16.msra.mxu0 %v698
    %732 = vmatprep.subr.bf16.mxu0 %v701
    %733 = vmatpush1.bf16.msra.mxu0 %v700
    %734 = vmatprep.subr.bf16.mxu0 %v703
    %735 = vmatpush1.bf16.msra.mxu0 %v702
    %736 = vmatprep.subr.bf16.mxu0 %v705
    %737 = vmatpush1.bf16.msra.mxu0 %v704
    %738 = vmatprep.subr.bf16.mxu0 %v707
    %739 = vmatpush1.bf16.msra.mxu0 %v706
    %740 = vmatprep.subr.bf16.mxu0 %v709
    %741 = vmatpush1.bf16.msra.mxu0 %v708
    %742 = vmatprep.subr.bf16.mxu0 0
    %743 = vmatpush1.bf16.msra.mxu0 0
    %744 = vmatprep.subr.bf16.mxu0 0
    %745 = vmatpush1.bf16.msra.mxu0 0
    %746 = vmatprep.subr.bf16.mxu0 0
    %747 = vmatpush1.bf16.msra.mxu0 0
    %748 = vmatprep.subr.bf16.mxu0 0
    %749 = vmatpush1.bf16.msra.mxu0 0
    %750 = vmatprep.subr.bf16.mxu0 0
    %751 = vmatpush1.bf16.msra.mxu0 0
    %752 = vmatprep.subr.bf16.mxu0 0
    %753 = vmatpush1.bf16.msra.mxu0 0
    %754 = vmatprep.subr.bf16.mxu0 0
    %755 = vmatpush1.bf16.msra.mxu0 0
    %756 = vmatprep.subr.bf16.mxu0 0
    %757 = vmatpush1.bf16.msra.mxu0 0
    %758 = vmatprep.mubr.bf16.mxu0 0
    %759 = vmatmul.mubr.bf16.gmra.mrb[0].mxu0 %v616
    %v760 = vpop.f32.mrb[0].mxu0
    %v761 = vadd.f32 %v639, %v760
    %v762 = vpop.f32.mrb[0].mxu0
    %v763 = vadd.f32 %v643, %v762
    %v764 = vpop.f32.mrb[0].mxu0
    %v765 = vpop.f32.mrb[0].mxu0
    %766 = vdwg.mxu0
    %v767 = vmax.f32 %v761, 0.0
    %v768 = vmax.f32 %v763, 0.0
    %v769 = vpack.c.bf16 %v767, %v767
    %v770 = vpack.c.bf16 %v768, %v768
    %v771 = vld [vmem:[#allocation7 + $0x300] sm:$0xf]
    %v772 = vld [vmem:[#allocation7 + $0x308] sm:$0xf]
    %v773 = vld [vmem:[#allocation7 + $0x310] sm:$0xf]
    %v774 = vld [vmem:[#allocation7 + $0x318] sm:$0xf]
    %v775 = vld [vmem:[#allocation7 + $0x320] sm:$0xf]
    %v776 = vld [vmem:[#allocation7 + $0x328] sm:$0xf]
    %v777 = vld [vmem:[#allocation7 + $0x330] sm:$0xf]
    %v778 = vld [vmem:[#allocation7 + $0x338] sm:$0xf]
    %v779 = vld [vmem:[#allocation7 + $0x340] sm:$0xf]
    %v780 = vld [vmem:[#allocation7 + $0x348] sm:$0xf]
    %v781 = vld [vmem:[#allocation7 + $0x350] sm:$0xf]
    %v782 = vld [vmem:[#allocation7 + $0x358] sm:$0xf]
    %v783 = vld [vmem:[#allocation7 + $0x360] sm:$0xf]
    %v784 = vld [vmem:[#allocation7 + $0x368] sm:$0xf]
    %v785 = vld [vmem:[#allocation7 + $0x370] sm:$0xf]
    %v786 = vld [vmem:[#allocation7 + $0x378] sm:$0xf]
    %v787 = vld [vmem:[#allocation7 + $0x380] sm:$0xf]
    %v788 = vld [vmem:[#allocation7 + $0x388] sm:$0xf]
    %v789 = vld [vmem:[#allocation7 + $0x390] sm:$0xf]
    %v790 = vld [vmem:[#allocation7 + $0x398] sm:$0xf]
    %v791 = vld [vmem:[#allocation7 + $0x3a0] sm:$0xf]
    %v792 = vld [vmem:[#allocation7 + $0x3a8] sm:$0xf]
    %v793 = vld [vmem:[#allocation7 + $0x3b0] sm:$0xf]
    %v794 = vld [vmem:[#allocation7 + $0x3b8] sm:$0xf]
    %v795 = vld [vmem:[#allocation7 + $0x3c0] sm:$0xf]
    %v796 = vld [vmem:[#allocation7 + $0x3c8] sm:$0xf]
    %v797 = vld [vmem:[#allocation7 + $0x3d0] sm:$0xf]
    %v798 = vld [vmem:[#allocation7 + $0x3d8] sm:$0xf]
    %v799 = vld [vmem:[#allocation7 + $0x3e0] sm:$0xf]
    %v800 = vld [vmem:[#allocation7 + $0x3e8] sm:$0xf]
    %v801 = vld [vmem:[#allocation7 + $0x3f0] sm:$0xf]
    %v802 = vld [vmem:[#allocation7 + $0x3f8] sm:$0xf]
    %v803 = vld [vmem:[#allocation8 + $0x5] ss:$0 sm:$0xff]
    %v836 = vunpack.c.l.b16 %v771
    %v837 = vunpack.c.l.b16 %v772
    %v838 = vunpack.c.l.b16 %v773
    %v839 = vunpack.c.l.b16 %v774
    %v840 = vunpack.c.l.b16 %v775
    %v841 = vunpack.c.l.b16 %v776
    %v842 = vunpack.c.l.b16 %v777
    %v843 = vunpack.c.l.b16 %v778
    %v844 = vunpack.c.l.b16 %v779
    %v845 = vunpack.c.l.b16 %v780
    %v846 = vunpack.c.l.b16 %v781
    %v847 = vunpack.c.l.b16 %v782
    %v848 = vunpack.c.l.b16 %v783
    %v849 = vunpack.c.l.b16 %v784
    %v850 = vunpack.c.l.b16 %v785
    %v851 = vunpack.c.l.b16 %v786
    %v852 = vunpack.c.l.b16 %v787
    %v853 = vunpack.c.l.b16 %v788
    %v854 = vunpack.c.l.b16 %v789
    %v855 = vunpack.c.l.b16 %v790
    %v856 = vunpack.c.l.b16 %v791
    %v857 = vunpack.c.l.b16 %v792
    %v858 = vunpack.c.l.b16 %v793
    %v859 = vunpack.c.l.b16 %v794
    %v860 = vunpack.c.l.b16 %v795
    %v861 = vunpack.c.l.b16 %v796
    %v862 = vunpack.c.l.b16 %v797
    %v863 = vunpack.c.l.b16 %v798
    %v864 = vunpack.c.l.b16 %v799
    %v865 = vunpack.c.l.b16 %v800
    %v866 = vunpack.c.l.b16 %v801
    %v867 = vunpack.c.l.b16 %v802
    %v868 = vpack.c.b16 %v837, %v836
    %v869 = vpack.c.b16 %v839, %v838
    %v870 = vpack.c.b16 %v841, %v840
    %v871 = vpack.c.b16 %v843, %v842
    %v872 = vpack.c.b16 %v845, %v844
    %v873 = vpack.c.b16 %v847, %v846
    %v874 = vpack.c.b16 %v849, %v848
    %v875 = vpack.c.b16 %v851, %v850
    %v876 = vpack.c.b16 %v853, %v852
    %v877 = vpack.c.b16 %v855, %v854
    %v878 = vpack.c.b16 %v857, %v856
    %v879 = vpack.c.b16 %v859, %v858
    %v880 = vpack.c.b16 %v861, %v860
    %v881 = vpack.c.b16 %v863, %v862
    %v882 = vpack.c.b16 %v865, %v864
    %v883 = vpack.c.b16 %v867, %v866
    %900 = vmatprep.subr.bf16.mxu0 0
    %901 = vmatpush1.bf16.msra.mxu0 %v868
    %902 = vmatprep.subr.bf16.mxu0 0
    %903 = vmatpush1.bf16.msra.mxu0 %v869
    %904 = vmatprep.subr.bf16.mxu0 0
    %905 = vmatpush1.bf16.msra.mxu0 %v870
    %906 = vmatprep.subr.bf16.mxu0 0
    %907 = vmatpush1.bf16.msra.mxu0 %v871
    %908 = vmatprep.subr.bf16.mxu0 0
    %909 = vmatpush1.bf16.msra.mxu0 %v872
    %910 = vmatprep.subr.bf16.mxu0 0
    %911 = vmatpush1.bf16.msra.mxu0 %v873
    %912 = vmatprep.subr.bf16.mxu0 0
    %913 = vmatpush1.bf16.msra.mxu0 %v874
    %914 = vmatprep.subr.bf16.mxu0 0
    %915 = vmatpush1.bf16.msra.mxu0 %v875
    %916 = vmatprep.subr.bf16.mxu0 0
    %917 = vmatpush1.bf16.msra.mxu0 %v876
    %918 = vmatprep.subr.bf16.mxu0 0
    %919 = vmatpush1.bf16.msra.mxu0 %v877
    %920 = vmatprep.subr.bf16.mxu0 0
    %921 = vmatpush1.bf16.msra.mxu0 %v878
    %922 = vmatprep.subr.bf16.mxu0 0
    %923 = vmatpush1.bf16.msra.mxu0 %v879
    %924 = vmatprep.subr.bf16.mxu0 0
    %925 = vmatpush1.bf16.msra.mxu0 %v880
    %926 = vmatprep.subr.bf16.mxu0 0
    %927 = vmatpush1.bf16.msra.mxu0 %v881
    %928 = vmatprep.subr.bf16.mxu0 0
    %929 = vmatpush1.bf16.msra.mxu0 %v882
    %930 = vmatprep.subr.bf16.mxu0 0
    %931 = vmatpush1.bf16.msra.mxu0 %v883
    %932 = vmatprep.mubr.bf16.mxu0 %v770
    %933 = vmatmul.mubr.bf16.gmra.mrb[0].mxu0 %v769
    %v934 = vpop.f32.mrb[0].mxu0
    %v935 = vadd.f32 %v803, %v934
    %v936 = vpop.f32.mrb[0].mxu0
    %v937 = vpop.f32.mrb[0].mxu0
    %v938 = vpop.f32.mrb[0].mxu0
    %939 = vdwg.mxu0
    %v940 = vmul.f32 %v935, 0.5
    %v941 = vtanh.pop %v940
    %v942 = vadd.f32 %v941, 1.0
    %v943 = vmul.f32 %v942, 0.5
    %944 = vrot.lane.b32.xlu0 %v495, 8
    %v945 = vpop.permute.xlu0 %944
    %v946 = vadd.f32 %v507, %v945
    %947 = vrot.lane.b32.xlu0 %v497, 16
    %v948 = vpop.permute.xlu0 %947
    %v949 = vadd.f32 %v946, %v948
    %950 = vst [vmem:[#allocation10] sm:$0xff] %v949
    %951 = vst [vmem:[#allocation10 + $0x8] sm:$0xff] %v943
    // Predicated region
    $region34: #{tpu_custom_call.1} parent=1 // pred_check
      _
    $region35: #{tpu_custom_call.1} parent=1 // pred_check_branch
      %953 = sbr.rel (0) target = $region37
    $region36: #{tpu_custom_call.1} parent=1 // pred_region
      %s955 = ssub.s32 256, 256
      %956 = vsyncadd [#allocation4], %s955
      %s958 = sshll.u32 [#allocation10], 4
      %s959 = int_to_ptr.vmem [resolvable:$true] %s958
      %961 = dma.vmem_to_hbm [thread:$0]  %s959, 256, %s4, [#allocation4]
    $region37: #{tpu_custom_call.1} parent=1 // pred_fallthru
      _
    // Predicated region
    $region38: #{tpu_custom_call.1} parent=1 // pred_check
      _
    $region39: #{tpu_custom_call.1} parent=1 // pred_check_branch
      %963 = sbr.rel (0) target = $region41
    $region40: #{tpu_custom_call.1} parent=1 // pred_region
      %964 = dma.done [#allocation4], 256
    $region41: #{tpu_custom_call.1} parent=1 // pred_fallthru
      _
    %965 = vsyncpa [#allocation3], 1
    %966 = vsyncpa [#allocation6], 1
    %967 = vsyncpa [#allocation9], 1
    %968 = vsyncpa [#allocation4], 1

</llo_original>
